<compile_context>
chip_gen: v5e
topology: v5e:2x2
jax: 0.10.0
libtpu: 0.0.40
codegen_flags: <defaults>
</compile_context>

<pallas_src>
import math
import jax
import jax.numpy as jnp
from jax.experimental import pallas as pl
from jax.experimental.pallas import tpu as pltpu

HIDDEN = 10
LANES = 128
ROW_ALIGN = 16  # sublane granularity valid for both f32 (8) and packed bf16 (16)


def _round_up(v, m):
    return ((v + m - 1) // m) * m


def _cdiv(a, b):
    return (a + b - 1) // b


def _mlp_kernel(params_ref, x_ref, o_ref):
    # params_ref (SMEM via scalar prefetch, f32[41]):
    #   [0:20)  w1 (10,2) row-major   -> params[2*j + k] = w1[j, k]
    #   [20:30) b1 (10,)
    #   [30:40) w2 (1,10)             -> params[30 + j]  = w2[0, j]
    #   [40]    b2
    # x_ref: (2, block_rows, 128) VMEM (f32 or bf16)   o_ref: (block_rows, 128) f32
    cdt = x_ref.dtype
    x0 = x_ref[0, :, :]  # feature 0, (block_rows, 128)
    x1 = x_ref[1, :, :]  # feature 1, (block_rows, 128)

    def wval(idx):
        s = params_ref[idx]  # f32 scalar from SMEM
        if cdt == jnp.float32:
            return s
        # bf16 path: keep the f32->bf16 convert at vector level on a replicated
        # (1,1) value (single vreg), not a scalar-core cast.
        return jnp.full((1, 1), s, jnp.float32).astype(cdt)

    def unit(j):
        # layer-1 FMAs + ReLU in the compute dtype (bf16 on v6e/v7x halves VALU
        # slots and HBM bytes); layer-2 multiply promotes to f32 (f32 accumulate).
        h = x0 * wval(2 * j) + x1 * wval(2 * j + 1) + wval(20 + j)
        h = jnp.maximum(h, 0.0)              # ReLU activation
        return h * params_ref[30 + j]        # bf16*f32 -> f32

    acc = unit(0) + params_ref[40]           # seed with unit 0 + b2 (no zeros init)
    for j in range(1, HIDDEN):
        acc = acc + unit(j)

    o_ref[...] = acc.astype(o_ref.dtype)


def _pack_params(w1, b1, w2, b2):
    return jnp.concatenate(
        [w1.reshape(-1), b1.reshape(-1), w2.reshape(-1), b2.reshape(-1)]
    ).astype(jnp.float32)  # (41,)


def simple_nn_forward_packed(x3, params, *, block_rows):
    """Fast-path entry point.

    x3:     (2, rows, 128) feature-major, batch index b = r*128 + lane,
            f32 or bf16, rows % block_rows == 0.
    params: (41,) f32 packed [w1, b1, w2, b2].
    Returns (rows, 128) f32, lane-dense (batch index b = r*128 + lane).
    """
    nfeat, rows, lanes = x3.shape
    assert nfeat == 2 and lanes == LANES and rows % block_rows == 0

    in_item = jnp.dtype(x3.dtype).itemsize
    # double-buffered input tile + output tile (+ headroom); cap under v7x VMEM.
    tile_bytes = block_rows * LANES * (2 * in_item + 4)
    vmem_limit = min(max(2 * tile_bytes + (4 << 20), 32 << 20), 56 << 20)

    return pl.pallas_call(
        _mlp_kernel,
        out_shape=jax.ShapeDtypeStruct((rows, LANES), jnp.float32),
        grid_spec=pltpu.PrefetchScalarGridSpec(
            num_scalar_prefetch=1,  # params -> SMEM once, before the grid
            grid=(rows // block_rows,),
            in_specs=[
                # NOTE(v5e): if DMA is exposed after removing the wrapper repack,
                # add pipeline_mode=pl.Buffered(3) here.
                pl.BlockSpec((2, block_rows, LANES), lambda i, p: (0, i, 0)),
            ],
            out_specs=pl.BlockSpec((block_rows, LANES), lambda i, p: (i, 0)),
        ),
        compiler_params=pltpu.CompilerParams(
            dimension_semantics=("parallel",),
            # let XLA fuse the pad/transpose producer of x into the kernel input
            allow_input_fusion=[False, True],
            vmem_limit_bytes=vmem_limit,
        ),
    )(params, x3)


def simple_nn_forward(x, w1, b1, w2, b2, *, block_rows=2048,
                      compute_dtype=jnp.float32):
    """x: (B, 2).  PyTorch-layout params: w1 (10,2), b1 (10,), w2 (1,10), b2 (1,).

    compute_dtype=jnp.bfloat16 is recommended on v6e/v7x (kernel is VALU-bound);
    keep jnp.float32 on v5e and when exact-module numerics are required.
    """
    B = x.shape[0]

    # --- batch tiling: batch -> (rows, 128 lanes), rows tiled by block_rows ---
    rows_needed = _cdiv(B, LANES)
    rows_cap = _round_up(max(rows_needed, ROW_ALIGN), ROW_ALIGN)
    br = _round_up(max(int(block_rows), ROW_ALIGN), ROW_ALIGN)
    br = min(br, rows_cap)
    if rows_cap >= 2 * ROW_ALIGN:
        # guarantee >= 2 grid steps so the "parallel" axis can be split across
        # the two v7x TensorCores.
        br = min(br, max(ROW_ALIGN, (rows_cap // 2) // ROW_ALIGN * ROW_ALIGN))
    rows = _round_up(rows_needed, br)
    b_pad = rows * LANES

    # --- one-time layout repack (pad + feature-major); allow_input_fusion lets
    # XLA fuse this into the pallas_call input instead of a separate HBM pass.
    xc = x.astype(compute_dtype)
    x_pad = jnp.zeros((b_pad, 2), compute_dtype).at[:B, :].set(xc)
    x3 = x_pad.T.reshape(2, rows, LANES)                    # (2, rows, 128)

    params = _pack_params(w1, b1, w2, b2)
    out = simple_nn_forward_packed(x3, params, block_rows=br)  # (rows, 128) f32

    # Module-parity (B, 1) output.  Downstream consumers that can take the
    # lane-dense (rows, 128) layout should call simple_nn_forward_packed and
    # skip this extra output pass.
    return out.reshape(b_pad)[:B].reshape(B, 1)


def xavier_uniform(key, fan_in, fan_out):
    # nn.init.xavier_uniform_ (gain=1): U(-a, a), a = sqrt(6/(fan_in+fan_out)).
    # PyTorch weight layout: (fan_out, fan_in).
    a = math.sqrt(6.0 / (fan_in + fan_out))
    return jax.random.uniform(key, (fan_out, fan_in), jnp.float32, -a, a)


def linear_bias_init(key, fan_in, fan_out):
    # nn.Linear default bias init: U(-1/sqrt(fan_in), 1/sqrt(fan_in))
    bound = 1.0 / math.sqrt(fan_in)
    return jax.random.uniform(key, (fan_out,), jnp.float32, -bound, bound)


def reference_forward(x, w1, b1, w2, b2):
    h = jnp.maximum(x @ w1.T + b1, 0.0)
    return h @ w2.T + b2


if __name__ == "__main__":
    key = jax.random.PRNGKey(0)
    k_x, k_w1, k_b1, k_w2, k_b2 = jax.random.split(key, 5)

    B = 5000  # exercises zero-padding and a multi-step batch grid (2 TC shardable)
    x = jax.random.normal(k_x, (B, 2), jnp.float32)

    # layer1: Linear(2, 10), xavier init; layer2: Linear(10, 1), xavier init
    w1 = xavier_uniform(k_w1, 2, 10)        # (10, 2)
    b1 = linear_bias_init(k_b1, 2, 10)      # (10,)
    w2 = xavier_uniform(k_w2, 10, 1)        # (1, 10)
    b2 = linear_bias_init(k_b2, 10, 1)      # (1,)

    ref = reference_forward(x, w1, b1, w2, b2)

    # default f32 data path: exact-module numerics
    out_f32 = jax.block_until_ready(simple_nn_forward(x, w1, b1, w2, b2))
    assert out_f32.shape == (B, 1)
    assert jnp.allclose(out_f32, ref, atol=1e-5, rtol=1e-5)

    # bf16 data path (v6e/v7x fast path): layer-1 in bf16, f32 accumulation
    out_bf16 = jax.block_until_ready(
        simple_nn_forward(x, w1, b1, w2, b2, compute_dtype=jnp.bfloat16))
    assert out_bf16.shape == (B, 1)
    assert jnp.allclose(out_bf16, ref, atol=1e-1, rtol=1e-1)  # bf16 tolerance

    print("KERNEL_OK")
</pallas_src>

<mosaic_0001>
module attributes {stable_mosaic.version = 11 : i64} {
  func.func @_mlp_kernel(%arg0: i32, %arg1: memref<41xf32, #tpu.memory_space<smem>>, %arg2: memref<2x16x128xf32, #tpu.memory_space<vmem>>, %arg3: memref<16x128xf32, #tpu.memory_space<vmem>>) attributes {dimension_semantics = [#tpu.dimension_semantics<parallel>], iteration_bounds = array<i64: 3>, scalar_prefetch = 1 : i64, scratch_operands = 0 : i64, tpu.core_type = #tpu.core_type<tc>, window_params = [{transform_indices = @transform_0, window_bounds = array<i64: 2, 16, 128>}, {transform_indices = @transform_1, window_bounds = array<i64: 16, 128>}]} {
    %c0 = arith.constant 0 : index
    %c0_0 = arith.constant 0 : index
    %c0_1 = arith.constant 0 : index
    %0 = vector.load %arg2[%c0, %c0_0, %c0_1] : memref<2x16x128xf32, #tpu.memory_space<vmem>>, vector<1x16x128xf32>
    %1 = vector.shape_cast %0 : vector<1x16x128xf32> to vector<16x128xf32>
    %c1 = arith.constant 1 : index
    %c0_2 = arith.constant 0 : index
    %c0_3 = arith.constant 0 : index
    %2 = vector.load %arg2[%c1, %c0_2, %c0_3] : memref<2x16x128xf32, #tpu.memory_space<vmem>>, vector<1x16x128xf32>
    %3 = vector.shape_cast %2 : vector<1x16x128xf32> to vector<16x128xf32>
    %c0_4 = arith.constant 0 : index
    %4 = memref.load %arg1[%c0_4] : memref<41xf32, #tpu.memory_space<smem>>
    %5 = vector.broadcast %4 : f32 to vector<16x128xf32>
    %6 = arith.mulf %1, %5 : vector<16x128xf32>
    %c1_5 = arith.constant 1 : index
    %7 = memref.load %arg1[%c1_5] : memref<41xf32, #tpu.memory_space<smem>>
    %8 = vector.broadcast %7 : f32 to vector<16x128xf32>
    %9 = arith.mulf %3, %8 : vector<16x128xf32>
    %10 = arith.addf %6, %9 : vector<16x128xf32>
    %c20 = arith.constant 20 : index
    %11 = memref.load %arg1[%c20] : memref<41xf32, #tpu.memory_space<smem>>
    %12 = vector.broadcast %11 : f32 to vector<16x128xf32>
    %13 = arith.addf %10, %12 : vector<16x128xf32>
    %cst = arith.constant 0.000000e+00 : f32
    %14 = vector.broadcast %cst : f32 to vector<16x128xf32>
    %15 = arith.maximumf %13, %14 : vector<16x128xf32>
    %c30 = arith.constant 30 : index
    %16 = memref.load %arg1[%c30] : memref<41xf32, #tpu.memory_space<smem>>
    %17 = vector.broadcast %16 : f32 to vector<16x128xf32>
    %18 = arith.mulf %15, %17 : vector<16x128xf32>
    %c40 = arith.constant 40 : index
    %19 = memref.load %arg1[%c40] : memref<41xf32, #tpu.memory_space<smem>>
    %20 = vector.broadcast %19 : f32 to vector<16x128xf32>
    %21 = arith.addf %18, %20 : vector<16x128xf32>
    %c2 = arith.constant 2 : index
    %22 = memref.load %arg1[%c2] : memref<41xf32, #tpu.memory_space<smem>>
    %23 = vector.broadcast %22 : f32 to vector<16x128xf32>
    %24 = arith.mulf %1, %23 : vector<16x128xf32>
    %c3 = arith.constant 3 : index
    %25 = memref.load %arg1[%c3] : memref<41xf32, #tpu.memory_space<smem>>
    %26 = vector.broadcast %25 : f32 to vector<16x128xf32>
    %27 = arith.mulf %3, %26 : vector<16x128xf32>
    %28 = arith.addf %24, %27 : vector<16x128xf32>
    %c21 = arith.constant 21 : index
    %29 = memref.load %arg1[%c21] : memref<41xf32, #tpu.memory_space<smem>>
    %30 = vector.broadcast %29 : f32 to vector<16x128xf32>
    %31 = arith.addf %28, %30 : vector<16x128xf32>
    %cst_6 = arith.constant 0.000000e+00 : f32
    %32 = vector.broadcast %cst_6 : f32 to vector<16x128xf32>
    %33 = arith.maximumf %31, %32 : vector<16x128xf32>
    %c31 = arith.constant 31 : index
    %34 = memref.load %arg1[%c31] : memref<41xf32, #tpu.memory_space<smem>>
    %35 = vector.broadcast %34 : f32 to vector<16x128xf32>
    %36 = arith.mulf %33, %35 : vector<16x128xf32>
    %37 = arith.addf %21, %36 : vector<16x128xf32>
    %c4 = arith.constant 4 : index
    %38 = memref.load %arg1[%c4] : memref<41xf32, #tpu.memory_space<smem>>
    %39 = vector.broadcast %38 : f32 to vector<16x128xf32>
    %40 = arith.mulf %1, %39 : vector<16x128xf32>
    %c5 = arith.constant 5 : index
    %41 = memref.load %arg1[%c5] : memref<41xf32, #tpu.memory_space<smem>>
    %42 = vector.broadcast %41 : f32 to vector<16x128xf32>
    %43 = arith.mulf %3, %42 : vector<16x128xf32>
    %44 = arith.addf %40, %43 : vector<16x128xf32>
    %c22 = arith.constant 22 : index
    %45 = memref.load %arg1[%c22] : memref<41xf32, #tpu.memory_space<smem>>
    %46 = vector.broadcast %45 : f32 to vector<16x128xf32>
    %47 = arith.addf %44, %46 : vector<16x128xf32>
    %cst_7 = arith.constant 0.000000e+00 : f32
    %48 = vector.broadcast %cst_7 : f32 to vector<16x128xf32>
    %49 = arith.maximumf %47, %48 : vector<16x128xf32>
    %c32 = arith.constant 32 : index
    %50 = memref.load %arg1[%c32] : memref<41xf32, #tpu.memory_space<smem>>
    %51 = vector.broadcast %50 : f32 to vector<16x128xf32>
    %52 = arith.mulf %49, %51 : vector<16x128xf32>
    %53 = arith.addf %37, %52 : vector<16x128xf32>
    %c6 = arith.constant 6 : index
    %54 = memref.load %arg1[%c6] : memref<41xf32, #tpu.memory_space<smem>>
    %55 = vector.broadcast %54 : f32 to vector<16x128xf32>
    %56 = arith.mulf %1, %55 : vector<16x128xf32>
    %c7 = arith.constant 7 : index
    %57 = memref.load %arg1[%c7] : memref<41xf32, #tpu.memory_space<smem>>
    %58 = vector.broadcast %57 : f32 to vector<16x128xf32>
    %59 = arith.mulf %3, %58 : vector<16x128xf32>
    %60 = arith.addf %56, %59 : vector<16x128xf32>
    %c23 = arith.constant 23 : index
    %61 = memref.load %arg1[%c23] : memref<41xf32, #tpu.memory_space<smem>>
    %62 = vector.broadcast %61 : f32 to vector<16x128xf32>
    %63 = arith.addf %60, %62 : vector<16x128xf32>
    %cst_8 = arith.constant 0.000000e+00 : f32
    %64 = vector.broadcast %cst_8 : f32 to vector<16x128xf32>
    %65 = arith.maximumf %63, %64 : vector<16x128xf32>
    %c33 = arith.constant 33 : index
    %66 = memref.load %arg1[%c33] : memref<41xf32, #tpu.memory_space<smem>>
    %67 = vector.broadcast %66 : f32 to vector<16x128xf32>
    %68 = arith.mulf %65, %67 : vector<16x128xf32>
    %69 = arith.addf %53, %68 : vector<16x128xf32>
    %c8 = arith.constant 8 : index
    %70 = memref.load %arg1[%c8] : memref<41xf32, #tpu.memory_space<smem>>
    %71 = vector.broadcast %70 : f32 to vector<16x128xf32>
    %72 = arith.mulf %1, %71 : vector<16x128xf32>
    %c9 = arith.constant 9 : index
    %73 = memref.load %arg1[%c9] : memref<41xf32, #tpu.memory_space<smem>>
    %74 = vector.broadcast %73 : f32 to vector<16x128xf32>
    %75 = arith.mulf %3, %74 : vector<16x128xf32>
    %76 = arith.addf %72, %75 : vector<16x128xf32>
    %c24 = arith.constant 24 : index
    %77 = memref.load %arg1[%c24] : memref<41xf32, #tpu.memory_space<smem>>
    %78 = vector.broadcast %77 : f32 to vector<16x128xf32>
    %79 = arith.addf %76, %78 : vector<16x128xf32>
    %cst_9 = arith.constant 0.000000e+00 : f32
    %80 = vector.broadcast %cst_9 : f32 to vector<16x128xf32>
    %81 = arith.maximumf %79, %80 : vector<16x128xf32>
    %c34 = arith.constant 34 : index
    %82 = memref.load %arg1[%c34] : memref<41xf32, #tpu.memory_space<smem>>
    %83 = vector.broadcast %82 : f32 to vector<16x128xf32>
    %84 = arith.mulf %81, %83 : vector<16x128xf32>
    %85 = arith.addf %69, %84 : vector<16x128xf32>
    %c10 = arith.constant 10 : index
    %86 = memref.load %arg1[%c10] : memref<41xf32, #tpu.memory_space<smem>>
    %87 = vector.broadcast %86 : f32 to vector<16x128xf32>
    %88 = arith.mulf %1, %87 : vector<16x128xf32>
    %c11 = arith.constant 11 : index
    %89 = memref.load %arg1[%c11] : memref<41xf32, #tpu.memory_space<smem>>
    %90 = vector.broadcast %89 : f32 to vector<16x128xf32>
    %91 = arith.mulf %3, %90 : vector<16x128xf32>
    %92 = arith.addf %88, %91 : vector<16x128xf32>
    %c25 = arith.constant 25 : index
    %93 = memref.load %arg1[%c25] : memref<41xf32, #tpu.memory_space<smem>>
    %94 = vector.broadcast %93 : f32 to vector<16x128xf32>
    %95 = arith.addf %92, %94 : vector<16x128xf32>
    %cst_10 = arith.constant 0.000000e+00 : f32
    %96 = vector.broadcast %cst_10 : f32 to vector<16x128xf32>
    %97 = arith.maximumf %95, %96 : vector<16x128xf32>
    %c35 = arith.constant 35 : index
    %98 = memref.load %arg1[%c35] : memref<41xf32, #tpu.memory_space<smem>>
    %99 = vector.broadcast %98 : f32 to vector<16x128xf32>
    %100 = arith.mulf %97, %99 : vector<16x128xf32>
    %101 = arith.addf %85, %100 : vector<16x128xf32>
    %c12 = arith.constant 12 : index
    %102 = memref.load %arg1[%c12] : memref<41xf32, #tpu.memory_space<smem>>
    %103 = vector.broadcast %102 : f32 to vector<16x128xf32>
    %104 = arith.mulf %1, %103 : vector<16x128xf32>
    %c13 = arith.constant 13 : index
    %105 = memref.load %arg1[%c13] : memref<41xf32, #tpu.memory_space<smem>>
    %106 = vector.broadcast %105 : f32 to vector<16x128xf32>
    %107 = arith.mulf %3, %106 : vector<16x128xf32>
    %108 = arith.addf %104, %107 : vector<16x128xf32>
    %c26 = arith.constant 26 : index
    %109 = memref.load %arg1[%c26] : memref<41xf32, #tpu.memory_space<smem>>
    %110 = vector.broadcast %109 : f32 to vector<16x128xf32>
    %111 = arith.addf %108, %110 : vector<16x128xf32>
    %cst_11 = arith.constant 0.000000e+00 : f32
    %112 = vector.broadcast %cst_11 : f32 to vector<16x128xf32>
    %113 = arith.maximumf %111, %112 : vector<16x128xf32>
    %c36 = arith.constant 36 : index
    %114 = memref.load %arg1[%c36] : memref<41xf32, #tpu.memory_space<smem>>
    %115 = vector.broadcast %114 : f32 to vector<16x128xf32>
    %116 = arith.mulf %113, %115 : vector<16x128xf32>
    %117 = arith.addf %101, %116 : vector<16x128xf32>
    %c14 = arith.constant 14 : index
    %118 = memref.load %arg1[%c14] : memref<41xf32, #tpu.memory_space<smem>>
    %119 = vector.broadcast %118 : f32 to vector<16x128xf32>
    %120 = arith.mulf %1, %119 : vector<16x128xf32>
    %c15 = arith.constant 15 : index
    %121 = memref.load %arg1[%c15] : memref<41xf32, #tpu.memory_space<smem>>
    %122 = vector.broadcast %121 : f32 to vector<16x128xf32>
    %123 = arith.mulf %3, %122 : vector<16x128xf32>
    %124 = arith.addf %120, %123 : vector<16x128xf32>
    %c27 = arith.constant 27 : index
    %125 = memref.load %arg1[%c27] : memref<41xf32, #tpu.memory_space<smem>>
    %126 = vector.broadcast %125 : f32 to vector<16x128xf32>
    %127 = arith.addf %124, %126 : vector<16x128xf32>
    %cst_12 = arith.constant 0.000000e+00 : f32
    %128 = vector.broadcast %cst_12 : f32 to vector<16x128xf32>
    %129 = arith.maximumf %127, %128 : vector<16x128xf32>
    %c37 = arith.constant 37 : index
    %130 = memref.load %arg1[%c37] : memref<41xf32, #tpu.memory_space<smem>>
    %131 = vector.broadcast %130 : f32 to vector<16x128xf32>
    %132 = arith.mulf %129, %131 : vector<16x128xf32>
    %133 = arith.addf %117, %132 : vector<16x128xf32>
    %c16 = arith.constant 16 : index
    %134 = memref.load %arg1[%c16] : memref<41xf32, #tpu.memory_space<smem>>
    %135 = vector.broadcast %134 : f32 to vector<16x128xf32>
    %136 = arith.mulf %1, %135 : vector<16x128xf32>
    %c17 = arith.constant 17 : index
    %137 = memref.load %arg1[%c17] : memref<41xf32, #tpu.memory_space<smem>>
    %138 = vector.broadcast %137 : f32 to vector<16x128xf32>
    %139 = arith.mulf %3, %138 : vector<16x128xf32>
    %140 = arith.addf %136, %139 : vector<16x128xf32>
    %c28 = arith.constant 28 : index
    %141 = memref.load %arg1[%c28] : memref<41xf32, #tpu.memory_space<smem>>
    %142 = vector.broadcast %141 : f32 to vector<16x128xf32>
    %143 = arith.addf %140, %142 : vector<16x128xf32>
    %cst_13 = arith.constant 0.000000e+00 : f32
    %144 = vector.broadcast %cst_13 : f32 to vector<16x128xf32>
    %145 = arith.maximumf %143, %144 : vector<16x128xf32>
    %c38 = arith.constant 38 : index
    %146 = memref.load %arg1[%c38] : memref<41xf32, #tpu.memory_space<smem>>
    %147 = vector.broadcast %146 : f32 to vector<16x128xf32>
    %148 = arith.mulf %145, %147 : vector<16x128xf32>
    %149 = arith.addf %133, %148 : vector<16x128xf32>
    %c18 = arith.constant 18 : index
    %150 = memref.load %arg1[%c18] : memref<41xf32, #tpu.memory_space<smem>>
    %151 = vector.broadcast %150 : f32 to vector<16x128xf32>
    %152 = arith.mulf %1, %151 : vector<16x128xf32>
    %c19 = arith.constant 19 : index
    %153 = memref.load %arg1[%c19] : memref<41xf32, #tpu.memory_space<smem>>
    %154 = vector.broadcast %153 : f32 to vector<16x128xf32>
    %155 = arith.mulf %3, %154 : vector<16x128xf32>
    %156 = arith.addf %152, %155 : vector<16x128xf32>
    %c29 = arith.constant 29 : index
    %157 = memref.load %arg1[%c29] : memref<41xf32, #tpu.memory_space<smem>>
    %158 = vector.broadcast %157 : f32 to vector<16x128xf32>
    %159 = arith.addf %156, %158 : vector<16x128xf32>
    %cst_14 = arith.constant 0.000000e+00 : f32
    %160 = vector.broadcast %cst_14 : f32 to vector<16x128xf32>
    %161 = arith.maximumf %159, %160 : vector<16x128xf32>
    %c39 = arith.constant 39 : index
    %162 = memref.load %arg1[%c39] : memref<41xf32, #tpu.memory_space<smem>>
    %163 = vector.broadcast %162 : f32 to vector<16x128xf32>
    %164 = arith.mulf %161, %163 : vector<16x128xf32>
    %165 = arith.addf %149, %164 : vector<16x128xf32>
    %c0_15 = arith.constant 0 : index
    %c0_16 = arith.constant 0 : index
    %166 = vector.load %arg3[%c0_15, %c0_16] : memref<16x128xf32, #tpu.memory_space<vmem>>, vector<16x128xf32>
    tpu.vector_store %arg3[%c0_15, %c0_16], %165 {strides = array<i32>} : memref<16x128xf32, #tpu.memory_space<vmem>>, vector<16x128xf32>,
    return
  }
  func.func @transform_0(%arg0: i32, %arg1: memref<41xf32, #tpu.memory_space<smem>>) -> (i32, i32, i32) {
    %c0_i32 = arith.constant 0 : i32
    %c0_i32_0 = arith.constant 0 : i32
    %c0_i32_1 = arith.constant 0 : i32
    return %c0_i32, %arg0, %c0_i32_0 : i32, i32, i32
  }
  func.func @transform_1(%arg0: i32, %arg1: memref<41xf32, #tpu.memory_space<smem>>) -> (i32, i32) {
    %c0_i32 = arith.constant 0 : i32
    %c0_i32_0 = arith.constant 0 : i32
    return %arg0, %c0_i32 : i32, i32
  }
}

</mosaic_0001>

<llo_original>
// kernel: tpu_custom_call.1
$region0: #{tpu_custom_call.1}
  #allocation0 [shape = 'u32[]', space=smem, size = 0x4, offset = 0x4, fixed_abs, tag = 'smem constant byte address 0x4 - core index']
  #allocation1 [shape = 'u32[72,128]{1,0:T(1,128)}', space=vmem, size = 0x9000, scoped, tag = 'internal scratch']
  #allocation2 [shape = 's32[1]{0}', space=sflag, size = 0x4, scoped, tag = 'scoped memory for tpu_custom_call.1']
  #allocation3 [shape = 'u8[512]{0}', space=smem, size = 0x200, scoped, tag = 'prefetched SMEM operand 0']
  #allocation8 [shape = 's32[]', space=sflag, size = 0x4, offset = 0, fixed_abs, tag = 'sflag constant byte address 0x0 - dummy sync flag']
  %s0 = inlined_call_operand.hbm [shape: f32[41], index: 0, kind: input, shape index: {}]
  %s1 = inlined_call_operand.hbm [shape: f32[2,48,128], index: 1, kind: input, shape index: {}]
  %s2 = inlined_call_operand.hbm [shape: f32[48,128], index: 2, kind: output, shape index: {}]
  %s3 = sld [smem:[#allocation0]]
  $region41: #{tpu_custom_call.1} parent=0
    _
  %s5 = ssub.s32 1, %s3
  %s6 = scalar_select 0, %s5, %s3
  %s8 = sshll.u32 %s0, 4
  %s9 = int_to_ptr.hbm [resolvable:$true] %s8
  %11 = dma.hbm_to_smem %s9, 16, [#allocation3], [#allocation2]
  %13 = dma.done [#allocation2], 16
  %14 = sfence
  $region1: #{tpu_custom_call.1} parent=0
    #allocation4 [shape = 'u8[32768]{0}', space=vmem, size = 0x8000, scoped, tag = 'input window, operand 1']
    #allocation5 [shape = 's32[2]{0}', space=sflag, size = 0x8, scoped, tag = 'scoped memory for tpu_custom_call.1']
    #allocation6 [shape = 's32[2]{0}', space=sflag, size = 0x8, scoped, tag = 'scoped memory for tpu_custom_call.1']
    #allocation7 [shape = 'u8[16384]{0}', space=vmem, size = 0x4000, scoped, tag = 'output window, operand 0']
    %15 = vsyncpa [#allocation5], 0
    %s16 = scalar_lea.sflag [#allocation5], 1
    %17 = vsyncpa %s16, 0
    %18 = vsyncpa [#allocation6], 0
    %s19 = scalar_lea.sflag [#allocation6], 1
    %20 = vsyncpa %s19, 0
    loop: start=0, step=1, limit=5
    $region2: #{tpu_custom_call.1} parent=1 // loop_pre_header
      _
    $region3: #{tpu_custom_call.1} parent=1 // loop_header
      %s22 = sphi 0, %s26
      %p23 = scmp.ge.s32.totalorder %s22, 5
      %s32 = sphi 0, %s34
      %s35 = sphi 0, %s32
      %s36 = sphi 0, %s35
      %s52 = sphi 0, %s36
      %s58 = sphi 0, %s60
      %s61 = sphi 0, %s58
      %s62 = sphi 0, %s61
      %s78 = sphi 0, %s62
    $region4: #{tpu_custom_call.1} parent=1 // loop_header_branch
      %25 = sbr.rel (%p23) target = $region8
    $region5: #{tpu_custom_call.1} parent=1 // loop_body
      %s27 = ssub.s32 %s22, 1
      %s28 = ssub.s32 %s22, 2
      %s29 = sadd.s32 %s22, 1
      %s30 = ssub.s32 %s22, %s29
      %p31 = scmp.eq.s32.totalorder %s30, 0
      %s33 = sadd.s32 %s32, 1
      %s34 = scalar_select %p31, %s32, %s33
      %p37 = pneg %p31
      %p38 = scmp.eq.s32.totalorder %s22, 2
      %p39 = por %p37, %p38
      %p40 = scmp.ne.s32.totalorder %s32, %s35
      %p41 = scmp.eq.s32.totalorder %s22, 0
      %p42 = por %p40, %p41
      %p43 = scmp.ne.s32.totalorder %s32, %s35
      %p44 = scmp.eq.s32.totalorder %s27, 2
      %p45 = por %p43, %p44
      %p46 = scmp.ne.s32.totalorder %s35, %s36
      %p47 = scmp.eq.s32.totalorder %s27, 0
      %p48 = por %p46, %p47
      %p49 = scmp.ne.s32.totalorder %s35, %s36
      %p50 = scmp.eq.s32.totalorder %s28, 2
      %p51 = por %p49, %p50
      %p53 = scmp.ne.s32.totalorder %s36, %s52
      %p54 = scmp.eq.s32.totalorder %s28, 0
      %p55 = por %p53, %p54
      %s56 = ssub.s32 %s22, %s29
      %p57 = scmp.eq.s32.totalorder %s56, 0
      %s59 = sadd.s32 %s58, 1
      %s60 = scalar_select %p57, %s58, %s59
      %p63 = pneg %p57
      %p64 = scmp.eq.s32.totalorder %s22, 2
      %p65 = por %p63, %p64
      %p66 = scmp.ne.s32.totalorder %s58, %s61
      %p67 = scmp.eq.s32.totalorder %s22, 0
      %p68 = por %p66, %p67
      %p69 = scmp.ne.s32.totalorder %s58, %s61
      %p70 = scmp.eq.s32.totalorder %s27, 2
      %p71 = por %p69, %p70
      %p72 = scmp.ne.s32.totalorder %s61, %s62
      %p73 = scmp.eq.s32.totalorder %s27, 0
      %p74 = por %p72, %p73
      %p75 = scmp.ne.s32.totalorder %s61, %s62
      %p76 = scmp.eq.s32.totalorder %s28, 2
      %p77 = por %p75, %p76
      %p79 = scmp.ne.s32.totalorder %s62, %s78
      %p80 = scmp.eq.s32.totalorder %s28, 0
      %p81 = por %p79, %p80
      %p82 = scmp.le.s32.totalorder 1, %s22
      %p83 = scmp.lt.s32.totalorder %s22, 4
      %p84 = pnand %p82, %p83
      %p85 = pneg %p84
      // Predicated region
      $region9: #{tpu_custom_call.1} parent=5 // pred_check
        _
      $region10: #{tpu_custom_call.1} parent=5 // pred_check_branch
        %87 = sbr.rel (%p84) target = $region12
      $region11: #{tpu_custom_call.1} parent=5 // pred_region
        %s88 = ssub.s32 %s22, 1
      $region12: #{tpu_custom_call.1} parent=5 // pred_fallthru
        _
      %p89 = scmp.lt.s32.totalorder %s22, 3
      // Predicated region
      $region13: #{tpu_custom_call.1} parent=5 // pred_check
        %p90 = pneg %p89
      $region14: #{tpu_custom_call.1} parent=5 // pred_check_branch
        %92 = sbr.rel (%p90) target = $region16
      $region15: #{tpu_custom_call.1} parent=5 // pred_region
        // Predicated region
        $region17: #{tpu_custom_call.1} parent=15 // pred_check
          %p93 = pneg %p42
        $region18: #{tpu_custom_call.1} parent=15 // pred_check_branch
          %95 = sbr.rel (%p93) target = $region20
        $region19: #{tpu_custom_call.1} parent=15 // pred_region
          #allocation9 [shape = 'u32[6]{0}', space=smem, size = 0x18, scoped, tag = 'DMA stride descriptor']
          %s96 = sand.u32 %s32, 1
          %s97 = scalar_lea.sflag [#allocation5], %s96
          %s98 = sand.u32 %s32, 1
          %s99 = smul.addr %s98, 32
          %s100 = scalar_lea.vmem [#allocation4], %s99
          %s101 = smul.u32 2, %s22
          %103 = vsyncadd %s97, 0
          %s104 = smul.addr %s101, 8
          %s105 = scalar_lea.hbm %s1, %s104
          %s107 = sshll.u32 1, 14
          %s108 = sxor.u32 4294967295, %s107
          %s110 = sld [smem:[#allocation0]]
          %s111 = sadd.s32 2, %s110
          %s113 = sshll.u32 7, 26
          %s114 = sxor.u32 4294967295, %s113
          %s115 = sand.u32 0, %s114
          %s116 = sshll.u32 %s111, 26
          %s117 = sor.u32 %s115, %s116
          %s118 = sshll.u32 %s105, 4
          %s119 = int_to_ptr.hbm [resolvable:$true] %s118
          %s120 = sshll.u32 %s100, 4
          %s121 = int_to_ptr.vmem [resolvable:$true] %s120
          %127 = sst [smem:[#allocation9]] 768
          %s128 = scalar_lea.smem [#allocation9], 1
          %129 = sst [smem:[%s128]] 256
          %s130 = scalar_lea.smem [#allocation9], 2
          %131 = sst [smem:[%s130]] 2
          %s132 = scalar_lea.smem [#allocation9], 3
          %133 = sst [smem:[%s132]] 128
          %s134 = scalar_lea.smem [#allocation9], 4
          %135 = sst [smem:[%s134]] 128
          %s136 = scalar_lea.smem [#allocation9], 5
          %137 = sst [smem:[%s136]] 8
          %139 = dma.general %s119, 512, %s121, %s97, [#allocation8], [#allocation9], %s117, 0
        $region20: #{tpu_custom_call.1} parent=15 // pred_fallthru
          _
      $region16: #{tpu_custom_call.1} parent=5 // pred_fallthru
        _
      %p140 = scmp.le.s32.totalorder 1, %s22
      %p141 = scmp.lt.s32.totalorder %s22, 4
      %p142 = pnand %p140, %p141
      %p143 = pneg %p142
      // Predicated region
      $region21: #{tpu_custom_call.1} parent=5 // pred_check
        _
      $region22: #{tpu_custom_call.1} parent=5 // pred_check_branch
        %145 = sbr.rel (%p142) target = $region24
      $region23: #{tpu_custom_call.1} parent=5 // pred_region
        %s146 = ssub.s32 %s22, 1
        %s147 = sand.u32 %s35, 1
        %s148 = scalar_lea.sflag [#allocation5], %s147
        %s149 = sand.u32 %s35, 1
        %s150 = smul.addr %s149, 32
        %s151 = scalar_lea.vmem [#allocation4], %s150
        // Predicated region
        $region25: #{tpu_custom_call.1} parent=23 // pred_check
          %p152 = pneg %p48
        $region26: #{tpu_custom_call.1} parent=23 // pred_check_branch
          %154 = sbr.rel (%p152) target = $region28
        $region27: #{tpu_custom_call.1} parent=23 // pred_region
          %156 = dma.done %s148, 512
        $region28: #{tpu_custom_call.1} parent=23 // pred_fallthru
          _
        %s157 = sand.u32 %s35, 1
        %s158 = scalar_lea.sflag [#allocation5], %s157
        %s159 = sand.u32 %s35, 1
        %s160 = smul.addr %s159, 32
        %s161 = scalar_lea.vmem [#allocation4], %s160
        %p162 = pneg %p48
        %p163 = pneg %p45
        %p164 = pneg %p74
        %p165 = pneg %p71
        %s166 = sand.u32 %s61, 1
        %s167 = scalar_lea.sflag [#allocation6], %s166
        %s168 = sand.u32 %s61, 1
        %s169 = smul.addr %s168, 16
        %s170 = scalar_lea.vmem [#allocation7], %s169
        %s171 = smul.u32 2, %s27
        %s172 = smul.u32 2, %s27
        %v173 = vld [vmem:[%s151] sm:$0xff]
        %v174 = vld [vmem:[%s151 + $0x8] sm:$0xff]
        %s175 = scalar_lea.vmem %s151, 16 [#allocation4]
        %v176 = vld [vmem:[%s175] sm:$0xff]
        %v177 = vld [vmem:[%s175 + $0x8] sm:$0xff]
        %s178 = sld [smem:[#allocation3]]
        %v179 = vstv %s178
        %v180 = vmul.f32 %v173, %v179
        %v181 = vmul.f32 %v174, %v179
        %s182 = sld [smem:[#allocation3 + $0x1]]
        %v183 = vstv %s182
        %v184 = vmul.f32 %v176, %v183
        %v185 = vmul.f32 %v177, %v183
        %v186 = vadd.f32 %v180, %v184
        %v187 = vadd.f32 %v181, %v185
        %s188 = sld [smem:[#allocation3 + $0x14]]
        %v189 = vstv %s188
        %v190 = vadd.f32 %v186, %v189
        %v191 = vadd.f32 %v187, %v189
        %v192 = vmax.f32 %v190, 0.0
        %v193 = vmax.f32 %v191, 0.0
        %s194 = sld [smem:[#allocation3 + $0x1e]]
        %v195 = vstv %s194
        %v196 = vmul.f32 %v192, %v195
        %v197 = vmul.f32 %v193, %v195
        %s198 = sld [smem:[#allocation3 + $0x28]]
        %v199 = vstv %s198
        %v200 = vadd.f32 %v196, %v199
        %v201 = vadd.f32 %v197, %v199
        %s202 = sld [smem:[#allocation3 + $0x2]]
        %v203 = vstv %s202
        %v204 = vmul.f32 %v173, %v203
        %v205 = vmul.f32 %v174, %v203
        %s206 = sld [smem:[#allocation3 + $0x3]]
        %v207 = vstv %s206
        %v208 = vmul.f32 %v176, %v207
        %v209 = vmul.f32 %v177, %v207
        %v210 = vadd.f32 %v204, %v208
        %v211 = vadd.f32 %v205, %v209
        %s212 = sld [smem:[#allocation3 + $0x15]]
        %v213 = vstv %s212
        %v214 = vadd.f32 %v210, %v213
        %v215 = vadd.f32 %v211, %v213
        %v216 = vmax.f32 %v214, 0.0
        %v217 = vmax.f32 %v215, 0.0
        %s218 = sld [smem:[#allocation3 + $0x1f]]
        %v219 = vstv %s218
        %v220 = vmul.f32 %v216, %v219
        %v221 = vmul.f32 %v217, %v219
        %v222 = vadd.f32 %v200, %v220
        %v223 = vadd.f32 %v201, %v221
        %s224 = sld [smem:[#allocation3 + $0x4]]
        %v225 = vstv %s224
        %v226 = vmul.f32 %v173, %v225
        %v227 = vmul.f32 %v174, %v225
        %s228 = sld [smem:[#allocation3 + $0x5]]
        %v229 = vstv %s228
        %v230 = vmul.f32 %v176, %v229
        %v231 = vmul.f32 %v177, %v229
        %v232 = vadd.f32 %v226, %v230
        %v233 = vadd.f32 %v227, %v231
        %s234 = sld [smem:[#allocation3 + $0x16]]
        %v235 = vstv %s234
        %v236 = vadd.f32 %v232, %v235
        %v237 = vadd.f32 %v233, %v235
        %v238 = vmax.f32 %v236, 0.0
        %v239 = vmax.f32 %v237, 0.0
        %s240 = sld [smem:[#allocation3 + $0x20]]
        %v241 = vstv %s240
        %v242 = vmul.f32 %v238, %v241
        %v243 = vmul.f32 %v239, %v241
        %v244 = vadd.f32 %v222, %v242
        %v245 = vadd.f32 %v223, %v243
        %s246 = sld [smem:[#allocation3 + $0x6]]
        %v247 = vstv %s246
        %v248 = vmul.f32 %v173, %v247
        %v249 = vmul.f32 %v174, %v247
        %s250 = sld [smem:[#allocation3 + $0x7]]
        %v251 = vstv %s250
        %v252 = vmul.f32 %v176, %v251
        %v253 = vmul.f32 %v177, %v251
        %v254 = vadd.f32 %v248, %v252
        %v255 = vadd.f32 %v249, %v253
        %s256 = sld [smem:[#allocation3 + $0x17]]
        %v257 = vstv %s256
        %v258 = vadd.f32 %v254, %v257
        %v259 = vadd.f32 %v255, %v257
        %v260 = vmax.f32 %v258, 0.0
        %v261 = vmax.f32 %v259, 0.0
        %s262 = sld [smem:[#allocation3 + $0x21]]
        %v263 = vstv %s262
        %v264 = vmul.f32 %v260, %v263
        %v265 = vmul.f32 %v261, %v263
        %v266 = vadd.f32 %v244, %v264
        %v267 = vadd.f32 %v245, %v265
        %s268 = sld [smem:[#allocation3 + $0x8]]
        %v269 = vstv %s268
        %v270 = vmul.f32 %v173, %v269
        %v271 = vmul.f32 %v174, %v269
        %s272 = sld [smem:[#allocation3 + $0x9]]
        %v273 = vstv %s272
        %v274 = vmul.f32 %v176, %v273
        %v275 = vmul.f32 %v177, %v273
        %v276 = vadd.f32 %v270, %v274
        %v277 = vadd.f32 %v271, %v275
        %s278 = sld [smem:[#allocation3 + $0x18]]
        %v279 = vstv %s278
        %v280 = vadd.f32 %v276, %v279
        %v281 = vadd.f32 %v277, %v279
        %v282 = vmax.f32 %v280, 0.0
        %v283 = vmax.f32 %v281, 0.0
        %s284 = sld [smem:[#allocation3 + $0x22]]
        %v285 = vstv %s284
        %v286 = vmul.f32 %v282, %v285
        %v287 = vmul.f32 %v283, %v285
        %v288 = vadd.f32 %v266, %v286
        %v289 = vadd.f32 %v267, %v287
        %s290 = sld [smem:[#allocation3 + $0xa]]
        %v291 = vstv %s290
        %v292 = vmul.f32 %v173, %v291
        %v293 = vmul.f32 %v174, %v291
        %s294 = sld [smem:[#allocation3 + $0xb]]
        %v295 = vstv %s294
        %v296 = vmul.f32 %v176, %v295
        %v297 = vmul.f32 %v177, %v295
        %v298 = vadd.f32 %v292, %v296
        %v299 = vadd.f32 %v293, %v297
        %s300 = sld [smem:[#allocation3 + $0x19]]
        %v301 = vstv %s300
        %v302 = vadd.f32 %v298, %v301
        %v303 = vadd.f32 %v299, %v301
        %v304 = vmax.f32 %v302, 0.0
        %v305 = vmax.f32 %v303, 0.0
        %s306 = sld [smem:[#allocation3 + $0x23]]
        %v307 = vstv %s306
        %v308 = vmul.f32 %v304, %v307
        %v309 = vmul.f32 %v305, %v307
        %v310 = vadd.f32 %v288, %v308
        %v311 = vadd.f32 %v289, %v309
        %s312 = sld [smem:[#allocation3 + $0xc]]
        %v313 = vstv %s312
        %v314 = vmul.f32 %v173, %v313
        %v315 = vmul.f32 %v174, %v313
        %s316 = sld [smem:[#allocation3 + $0xd]]
        %v317 = vstv %s316
        %v318 = vmul.f32 %v176, %v317
        %v319 = vmul.f32 %v177, %v317
        %v320 = vadd.f32 %v314, %v318
        %v321 = vadd.f32 %v315, %v319
        %s322 = sld [smem:[#allocation3 + $0x1a]]
        %v323 = vstv %s322
        %v324 = vadd.f32 %v320, %v323
        %v325 = vadd.f32 %v321, %v323
        %v326 = vmax.f32 %v324, 0.0
        %v327 = vmax.f32 %v325, 0.0
        %s328 = sld [smem:[#allocation3 + $0x24]]
        %v329 = vstv %s328
        %v330 = vmul.f32 %v326, %v329
        %v331 = vmul.f32 %v327, %v329
        %v332 = vadd.f32 %v310, %v330
        %v333 = vadd.f32 %v311, %v331
        %s334 = sld [smem:[#allocation3 + $0xe]]
        %v335 = vstv %s334
        %v336 = vmul.f32 %v173, %v335
        %v337 = vmul.f32 %v174, %v335
        %s338 = sld [smem:[#allocation3 + $0xf]]
        %v339 = vstv %s338
        %v340 = vmul.f32 %v176, %v339
        %v341 = vmul.f32 %v177, %v339
        %v342 = vadd.f32 %v336, %v340
        %v343 = vadd.f32 %v337, %v341
        %s344 = sld [smem:[#allocation3 + $0x1b]]
        %v345 = vstv %s344
        %v346 = vadd.f32 %v342, %v345
        %v347 = vadd.f32 %v343, %v345
        %v348 = vmax.f32 %v346, 0.0
        %v349 = vmax.f32 %v347, 0.0
        %s350 = sld [smem:[#allocation3 + $0x25]]
        %v351 = vstv %s350
        %v352 = vmul.f32 %v348, %v351
        %v353 = vmul.f32 %v349, %v351
        %v354 = vadd.f32 %v332, %v352
        %v355 = vadd.f32 %v333, %v353
        %s356 = sld [smem:[#allocation3 + $0x10]]
        %v357 = vstv %s356
        %v358 = vmul.f32 %v173, %v357
        %v359 = vmul.f32 %v174, %v357
        %s360 = sld [smem:[#allocation3 + $0x11]]
        %v361 = vstv %s360
        %v362 = vmul.f32 %v176, %v361
        %v363 = vmul.f32 %v177, %v361
        %v364 = vadd.f32 %v358, %v362
        %v365 = vadd.f32 %v359, %v363
        %s366 = sld [smem:[#allocation3 + $0x1c]]
        %v367 = vstv %s366
        %v368 = vadd.f32 %v364, %v367
        %v369 = vadd.f32 %v365, %v367
        %v370 = vmax.f32 %v368, 0.0
        %v371 = vmax.f32 %v369, 0.0
        %s372 = sld [smem:[#allocation3 + $0x26]]
        %v373 = vstv %s372
        %v374 = vmul.f32 %v370, %v373
        %v375 = vmul.f32 %v371, %v373
        %v376 = vadd.f32 %v354, %v374
        %v377 = vadd.f32 %v355, %v375
        %s378 = sld [smem:[#allocation3 + $0x12]]
        %v379 = vstv %s378
        %v380 = vmul.f32 %v173, %v379
        %v381 = vmul.f32 %v174, %v379
        %s382 = sld [smem:[#allocation3 + $0x13]]
        %v383 = vstv %s382
        %v384 = vmul.f32 %v176, %v383
        %v385 = vmul.f32 %v177, %v383
        %v386 = vadd.f32 %v380, %v384
        %v387 = vadd.f32 %v381, %v385
        %s388 = sld [smem:[#allocation3 + $0x1d]]
        %v389 = vstv %s388
        %v390 = vadd.f32 %v386, %v389
        %v391 = vadd.f32 %v387, %v389
        %v392 = vmax.f32 %v390, 0.0
        %v393 = vmax.f32 %v391, 0.0
        %s394 = sld [smem:[#allocation3 + $0x27]]
        %v395 = vstv %s394
        %v396 = vmul.f32 %v392, %v395
        %v397 = vmul.f32 %v393, %v395
        %v398 = vadd.f32 %v376, %v396
        %v399 = vadd.f32 %v377, %v397
        %400 = vst [vmem:[%s170] sm:$0xff] %v398
        %401 = vst [vmem:[%s170 + $0x8] sm:$0xff] %v399
        %s402 = sand.u32 %s61, 1
        %s403 = scalar_lea.sflag [#allocation6], %s402
        %s404 = sand.u32 %s61, 1
        %s405 = smul.addr %s404, 16
        %s406 = scalar_lea.vmem [#allocation7], %s405
        // Predicated region
        $region29: #{tpu_custom_call.1} parent=23 // pred_check
          %p407 = pneg %p71
        $region30: #{tpu_custom_call.1} parent=23 // pred_check_branch
          %409 = sbr.rel (%p407) target = $region32
        $region31: #{tpu_custom_call.1} parent=23 // pred_region
          %s410 = smul.u32 2, %s27
          %412 = vsyncadd %s403, 0
          %s413 = smul.addr %s410, 8
          %s414 = scalar_lea.hbm %s2, %s413
          %s415 = sshll.u32 %s406, 4
          %s416 = int_to_ptr.vmem [resolvable:$true] %s415
          %s417 = sshll.u32 %s414, 4
          %s418 = int_to_ptr.hbm [resolvable:$true] %s417
          %423 = dma.vmem_to_hbm [thread:$0]  %s416, 256, %s418, %s403, 128, 128, 8
        $region32: #{tpu_custom_call.1} parent=23 // pred_fallthru
          _
      $region24: #{tpu_custom_call.1} parent=5 // pred_fallthru
        _
      %p424 = scmp.le.s32.totalorder 2, %s22
      // Predicated region
      $region33: #{tpu_custom_call.1} parent=5 // pred_check
        %p425 = pneg %p424
      $region34: #{tpu_custom_call.1} parent=5 // pred_check_branch
        %427 = sbr.rel (%p425) target = $region36
      $region35: #{tpu_custom_call.1} parent=5 // pred_region
        %s428 = ssub.s32 %s22, 2
        // Predicated region
        $region37: #{tpu_custom_call.1} parent=35 // pred_check
          %p429 = pneg %p77
        $region38: #{tpu_custom_call.1} parent=35 // pred_check_branch
          %431 = sbr.rel (%p429) target = $region40
        $region39: #{tpu_custom_call.1} parent=35 // pred_region
          %s432 = sand.u32 %s62, 1
          %s433 = scalar_lea.sflag [#allocation6], %s432
          %s434 = sand.u32 %s62, 1
          %s435 = smul.addr %s434, 16
          %s436 = scalar_lea.vmem [#allocation7], %s435
          %438 = dma.done %s433, 256
        $region40: #{tpu_custom_call.1} parent=35 // pred_fallthru
          _
      $region36: #{tpu_custom_call.1} parent=5 // pred_fallthru
        _
    $region6: #{tpu_custom_call.1} parent=1 // loop_footer
      %s26 = sadd.s32 1, %s22
    $region7: #{tpu_custom_call.1} parent=1 // loop_footer_branch
      %21 = sbr.rel target = $region3
    $region8: #{tpu_custom_call.1} parent=1 // loop_exit
      _
    %439 = vsyncpa [#allocation5], 1
    %s440 = scalar_lea.sflag [#allocation5], 1
    %441 = vsyncpa %s440, 1
    %442 = vsyncpa [#allocation6], 1
    %s443 = scalar_lea.sflag [#allocation6], 1
    %444 = vsyncpa %s443, 1

</llo_original>
